<compile_context>
chip_gen: v7x
topology: tpu7x:2x2x1
jax: 0.10.0
libtpu: 0.0.40
codegen_flags: <defaults>
</compile_context>

<pallas_src>
import functools

import numpy as np
import jax
import jax.numpy as jnp
from jax import lax
from jax.experimental import pallas as pl
from jax.experimental.pallas import tpu as pltpu

SHIFT_BITS = 7
NUM_SHIFTS = 2

EW_COLS = 1024                       # lane-dense elementwise tile width
VMEM_LIMIT = 32 * 1024 * 1024        # safe on v5e / v6e / v7x

# matmul tile caps (adaptive per layer, see matmul_scaled_bias)
M_CAP, N_CAP, K_CAP = 1024, 1024, 3584


def _cdiv(a, b):
    return -(-a // b)


def _round_up(x, m):
    return _cdiv(x, m) * m


# ---------------------------------------------------------------------------
# elementwise helpers (flatten to lane-dense 2D blocks)
# ---------------------------------------------------------------------------
def _flatten_pad_2d(x, max_rows):
    """Flatten to 1D, zero-pad, reshape to (rows, EW_COLS); rows % block_rows == 0."""
    flat = x.reshape(-1)
    n = flat.shape[0]
    rows = _round_up(_cdiv(n, EW_COLS), 16)
    block_rows = min(max_rows, rows)
    rows = _round_up(rows, block_rows)
    total = rows * EW_COLS
    if total != n:
        flat = jnp.pad(flat, (0, total - n))
    return flat.reshape(rows, EW_COLS), n, block_rows


def _unflatten_2d(y2d, n, shape):
    return y2d.reshape(-1)[:n].reshape(shape)


# ---------------------------------------------------------------------------
# Pallas kernel: global max(|clamp(w, -1, 1)|) reduction
# ---------------------------------------------------------------------------
def _maxabs_kernel(w_ref, o_ref):
    @pl.when(pl.program_id(0) == 0)
    def _():
        o_ref[...] = jnp.zeros_like(o_ref)

    w = jnp.clip(w_ref[...], -1.0, 1.0)
    o_ref[...] = jnp.maximum(o_ref[...],
                             jnp.max(jnp.abs(w), axis=(0, 1), keepdims=True))


# ---------------------------------------------------------------------------
# Pallas kernel: Quantize_lightnn (2 power-of-two shifts, shiftBits=7)
# ---------------------------------------------------------------------------
def _q1(t):
    s = jnp.sign(t)
    a = jnp.abs(t)
    lg = jnp.log(a) / np.log(2.0)                  # log(0) -> -inf, like torch
    e = jnp.clip(jnp.round(lg), -float(SHIFT_BITS), 0.0)
    return s * jnp.exp2(e)


def _quantize_kernel(maxv_ref, w_ref, o_ref):
    mv = jnp.maximum(maxv_ref[...], 1e-12)         # guard all-zero tensors (0/0)
    w = jnp.clip(w_ref[...], -1.0, 1.0)            # weight.data.clamp_(-1, 1)
    t = w / mv
    r = _q1(t)
    for _ in range(NUM_SHIFTS - 1):
        r = r + _q1(t - r)
    # r is a sum of two signed powers of two whose exponents differ by <= 7,
    # so the bf16 cast below is exact.
    o_ref[...] = r.astype(o_ref.dtype)


def quantize_weight(w):
    """Quantize_lightnn(clamp(w,-1,1)/max, numShifts=2).

    Returns (base_bf16, maxv(1,1) f32); the effective PyTorch weight is
    base * maxv — the scale is applied after the matmul instead.
    """
    w2d, nel, br = _flatten_pad_2d(w, max_rows=1024)
    grid = (w2d.shape[0] // br,)
    maxv = pl.pallas_call(
        _maxabs_kernel,
        out_shape=jax.ShapeDtypeStruct((1, 1), jnp.float32),
        grid=grid,
        in_specs=[pl.BlockSpec((br, EW_COLS), lambda i: (i, 0))],
        out_specs=pl.BlockSpec((1, 1), lambda i: (0, 0)),
        compiler_params=pltpu.CompilerParams(
            dimension_semantics=("arbitrary",), vmem_limit_bytes=VMEM_LIMIT),
    )(w2d)
    base2d = pl.pallas_call(
        _quantize_kernel,
        out_shape=jax.ShapeDtypeStruct(w2d.shape, jnp.bfloat16),
        grid=grid,
        in_specs=[pl.BlockSpec((1, 1), lambda i: (0, 0)),
                  pl.BlockSpec((br, EW_COLS), lambda i: (i, 0))],
        out_specs=pl.BlockSpec((br, EW_COLS), lambda i: (i, 0)),
        compiler_params=pltpu.CompilerParams(
            dimension_semantics=("parallel",), vmem_limit_bytes=VMEM_LIMIT),
    )(maxv, w2d)
    return _unflatten_2d(base2d, nel, w.shape), maxv


# ---------------------------------------------------------------------------
# Pallas kernel: elementwise max of 4 arrays (2x2 ceil-mode max-pool)
# ---------------------------------------------------------------------------
def _max4_kernel(a_ref, b_ref, c_ref, d_ref, o_ref):
    o_ref[...] = jnp.maximum(jnp.maximum(a_ref[...], b_ref[...]),
                             jnp.maximum(c_ref[...], d_ref[...]))


def _max4_elementwise(a, b, c, d):
    shape, dtype = a.shape, a.dtype
    a2, nel, br = _flatten_pad_2d(a, max_rows=512)
    b2 = _flatten_pad_2d(b, max_rows=512)[0]
    c2 = _flatten_pad_2d(c, max_rows=512)[0]
    d2 = _flatten_pad_2d(d, max_rows=512)[0]
    spec = pl.BlockSpec((br, EW_COLS), lambda i: (i, 0))
    out2d = pl.pallas_call(
        _max4_kernel,
        out_shape=jax.ShapeDtypeStruct(a2.shape, dtype),
        grid=(a2.shape[0] // br,),
        in_specs=[spec, spec, spec, spec],
        out_specs=spec,
        compiler_params=pltpu.CompilerParams(
            dimension_semantics=("parallel",), vmem_limit_bytes=VMEM_LIMIT),
    )(a2, b2, c2, d2)
    return _unflatten_2d(out2d, nel, shape)


def maxpool2x2_ceil(x):
    """MaxPool2d(kernel=2, stride=2, ceil_mode=True) in NHWC."""
    n, h, w, c = x.shape
    ho, wo = _cdiv(h, 2), _cdiv(w, 2)
    if (ho * 2, wo * 2) != (h, w):
        x = jnp.pad(x, ((0, 0), (0, ho * 2 - h), (0, wo * 2 - w), (0, 0)),
                    constant_values=-jnp.inf)
    a = x[:, 0::2, 0::2, :]
    b = x[:, 0::2, 1::2, :]
    cc = x[:, 1::2, 0::2, :]
    d = x[:, 1::2, 1::2, :]
    return _max4_elementwise(a, b, cc, d)


# ---------------------------------------------------------------------------
# Pallas kernel: tiled bf16 matmul * scale + bias (+ fused ReLU) on the MXU
# ---------------------------------------------------------------------------
def _matmul_kernel(a_ref, b_ref, bias_ref, scale_ref, o_ref, acc_ref, *, relu):
    @pl.when(pl.program_id(2) == 0)
    def _():
        acc_ref[...] = jnp.zeros_like(acc_ref)

    acc_ref[...] += jnp.dot(a_ref[...], b_ref[...],
                            preferred_element_type=jnp.float32)

    @pl.when(pl.program_id(2) == pl.num_programs(2) - 1)
    def _():
        r = acc_ref[...] * scale_ref[...] + bias_ref[...]
        if relu:
            r = jnp.maximum(r, 0.0)
        o_ref[...] = r.astype(o_ref.dtype)


def matmul_scaled_bias(a, b, bias, scale, relu):
    """(a @ b) * scale + bias (optional fused ReLU). a:(M,K), b:(K,N) -> bf16."""
    M, K = a.shape
    K2, N = b.shape
    assert K == K2
    # adaptive, lane/sublane aligned tiles with minimal padding
    nm = _cdiv(M, M_CAP); tm = _round_up(_cdiv(M, nm), 16)
    nn = _cdiv(N, N_CAP); tn = _round_up(_cdiv(N, nn), 128)
    nk = _cdiv(K, K_CAP); tk = _round_up(_cdiv(K, nk), 128)
    Mp, Np, Kp = nm * tm, nn * tn, nk * tk

    a = a.astype(jnp.bfloat16)
    b = b.astype(jnp.bfloat16)
    if (Mp, Kp) != (M, K):
        a = jnp.pad(a, ((0, Mp - M), (0, Kp - K)))
    if (Kp, Np) != (K, N):
        b = jnp.pad(b, ((0, Kp - K), (0, Np - N)))
    bias2 = bias.astype(jnp.float32).reshape(1, N)
    if Np != N:
        bias2 = jnp.pad(bias2, ((0, 0), (0, Np - N)))
    scale2 = scale.astype(jnp.float32).reshape(1, 1)

    out = pl.pallas_call(
        functools.partial(_matmul_kernel, relu=relu),
        out_shape=jax.ShapeDtypeStruct((Mp, Np), jnp.bfloat16),
        grid=(nm, nn, nk),
        in_specs=[pl.BlockSpec((tm, tk), lambda i, j, k: (i, k)),
                  pl.BlockSpec((tk, tn), lambda i, j, k: (k, j)),
                  pl.BlockSpec((1, tn), lambda i, j, k: (0, j)),
                  pl.BlockSpec((1, 1), lambda i, j, k: (0, 0))],
        out_specs=pl.BlockSpec((tm, tn), lambda i, j, k: (i, j)),
        scratch_shapes=[pltpu.VMEM((tm, tn), jnp.float32)],
        compiler_params=pltpu.CompilerParams(
            dimension_semantics=("parallel", "parallel", "arbitrary"),
            vmem_limit_bytes=VMEM_LIMIT),
    )(a, b, bias2, scale2)
    if (Mp, Np) != (M, N):
        out = out[:M, :N]
    return out


# ---------------------------------------------------------------------------
# conv / conv-transpose wrappers (NHWC, glue in JAX, matmul in Pallas)
# ---------------------------------------------------------------------------
def conv2d_nhwc(x, w_hwio, bias, scale, padding=0, relu=False):
    """x: (N,H,W,Cin) bf16; w_hwio: (kh,kw,Cin,Cout) bf16 quantized base; stride 1."""
    kh, kw, cin, cout = w_hwio.shape
    n = x.shape[0]
    if padding > 0:
        x = jnp.pad(x, ((0, 0), (padding, padding), (padding, padding), (0, 0)))
    h, w = x.shape[1], x.shape[2]
    ho, wo = h - kh + 1, w - kw + 1
    if kh == 1 and kw == 1:
        a = x.reshape(n * ho * wo, cin)                     # free reshape
    else:
        # TODO(synk): an implicit-GEMM formulation (index_map walking the kh*kw
        # window offsets) would avoid materializing the duplicated im2col matrix.
        cols = [lax.dynamic_slice(x, (0, i, j, 0), (n, ho, wo, cin))
                for i in range(kh) for j in range(kw)]
        a = jnp.stack(cols, axis=3).reshape(n * ho * wo, kh * kw * cin)
    bmat = w_hwio.reshape(kh * kw * cin, cout)
    y = matmul_scaled_bias(a, bmat, bias, scale, relu)
    return y.reshape(n, ho, wo, cout)


def conv_transpose2d_nhwc(x, layer, stride, k):
    """PyTorch ConvTranspose2d(k, stride, bias=False) as dilate + pad + conv."""
    n, h, w, c = x.shape
    if stride > 1:
        hd, wd = (h - 1) * stride + 1, (w - 1) * stride + 1
        x = jnp.zeros((n, hd, wd, c), x.dtype).at[:, ::stride, ::stride, :].set(x)
    # TODO(synk): the fixed bilinear upsamplers could use sub-pixel decomposition
    # to skip the mostly-zero dilated conv; kept generic for fidelity.
    return conv2d_nhwc(x, layer["w"], layer["b"], layer["scale"],
                       padding=k - 1, relu=False)


# ---------------------------------------------------------------------------
# parameters (deterministic synthetic init; shapes from FCN8s_lightnn.__init__)
# ---------------------------------------------------------------------------
def get_upsampling_weight(in_channels, out_channels, kernel_size):
    factor = (kernel_size + 1) // 2
    center = factor - 1 if kernel_size % 2 == 1 else factor - 0.5
    og = np.ogrid[:kernel_size, :kernel_size]
    filt = (1 - abs(og[0] - center) / factor) * (1 - abs(og[1] - center) / factor)
    w = np.zeros((in_channels, out_channels, kernel_size, kernel_size),
                 dtype=np.float32)
    w[range(in_channels), range(out_channels), :, :] = filt
    return jnp.asarray(w)


def make_params(key, num_classes):
    conv_specs = [
        ("conv1_1", 64, 3, 3), ("conv1_2", 64, 64, 3),
        ("conv2_1", 128, 64, 3), ("conv2_2", 128, 128, 3),
        ("conv3_1", 256, 128, 3), ("conv3_2", 256, 256, 3), ("conv3_3", 256, 256, 3),
        ("conv4_1", 512, 256, 3), ("conv4_2", 512, 512, 3), ("conv4_3", 512, 512, 3),
        ("conv5_1", 512, 512, 3), ("conv5_2", 512, 512, 3), ("conv5_3", 512, 512, 3),
        ("fc6", 4096, 512, 7), ("fc7", 4096, 4096, 1),
        # NOTE: PyTorch zero-inits the score heads (trivially-zero output); we
        # use small random values so the synthetic model does non-trivial work.
        ("score_fr", num_classes, 4096, 1),
        ("score_pool3", num_classes, 256, 1),
        ("score_pool4", num_classes, 512, 1),
    ]
    params = {}
    keys = jax.random.split(key, 2 * len(conv_specs))
    for idx, (name, cout, cin, k) in enumerate(conv_specs):
        fan_in = cin * k * k
        w = jax.random.normal(keys[2 * idx], (cout, cin, k, k),
                              jnp.float32) / np.sqrt(fan_in)
        b = jax.random.normal(keys[2 * idx + 1], (cout,), jnp.float32) * 0.01
        params[name] = {"w": w, "b": b}
    for name, k in [("upscore2", 4), ("upscore_pool4", 4), ("upscore8", 16)]:
        params[name] = {"w": get_upsampling_weight(num_classes, num_classes, k)}
    return params


def prepare_params(params):
    """One-time step: quantize every Conv2d / ConvTranspose2d weight with the
    Pallas quantizer (the PyTorch module does this at the top of every forward)
    and lay the bf16 base out as a (kh, kw, Cin, Cout) matmul operand."""
    qp = {}
    for name, p in params.items():
        base, maxv = quantize_weight(p["w"])
        if name.startswith("upscore"):
            # ConvTranspose2d weight (Cin, Cout, k, k) -> flipped conv weight, HWIO
            w_hwio = jnp.flip(base, axis=(2, 3)).transpose(2, 3, 0, 1)
            bias = jnp.zeros((base.shape[1],), jnp.float32)
        else:
            # Conv2d weight (Cout, Cin, kh, kw) -> HWIO
            w_hwio = base.transpose(2, 3, 1, 0)
            bias = p["b"]
        qp[name] = {"w": w_hwio, "b": bias, "scale": maxv}
    return qp


# ---------------------------------------------------------------------------
# forward pass (mirrors FCN8s_lightnn.forward)
# ---------------------------------------------------------------------------
def fcn8s_forward(qp, x_nchw):
    xs = x_nchw.shape
    h = x_nchw.transpose(0, 2, 3, 1).astype(jnp.bfloat16)   # NHWC bf16

    def c(name, h, pad, relu=True, extra=None):
        layer = qp[name]
        scale = layer["scale"] if extra is None else layer["scale"] * extra
        return conv2d_nhwc(h, layer["w"], layer["b"], scale,
                           padding=pad, relu=relu)

    # features3 (conv1..conv3 + pools), conv1_1 has 100-padding
    h = c("conv1_1", h, 100)
    h = c("conv1_2", h, 1)
    h = maxpool2x2_ceil(h)
    h = c("conv2_1", h, 1)
    h = c("conv2_2", h, 1)
    h = maxpool2x2_ceil(h)
    h = c("conv3_1", h, 1)
    h = c("conv3_2", h, 1)
    h = c("conv3_3", h, 1)
    pool3 = maxpool2x2_ceil(h)
    # features4
    h = c("conv4_1", pool3, 1)
    h = c("conv4_2", h, 1)
    h = c("conv4_3", h, 1)
    pool4 = maxpool2x2_ceil(h)
    # features5
    h = c("conv5_1", pool4, 1)
    h = c("conv5_2", h, 1)
    h = c("conv5_3", h, 1)
    pool5 = maxpool2x2_ceil(h)

    # score_fr = fc6 -> ReLU -> Dropout -> fc7 -> ReLU -> Dropout -> score_fr
    # TODO(synk): nn.Dropout treated as identity (inference semantics).
    h = c("fc6", pool5, 0)
    h = c("fc7", h, 0)
    score_fr = c("score_fr", h, 0, relu=False)

    upscore2 = conv_transpose2d_nhwc(score_fr, qp["upscore2"], 2, 4)
    # the 0.01 / 0.0001 scalings are folded into the matmul scale (bias unscaled)
    score_pool4 = c("score_pool4", pool4, 0, relu=False, extra=0.01)
    h2, w2 = upscore2.shape[1], upscore2.shape[2]
    fuse4 = score_pool4[:, 5:5 + h2, 5:5 + w2, :] + upscore2
    upscore_pool4 = conv_transpose2d_nhwc(fuse4, qp["upscore_pool4"], 2, 4)

    score_pool3 = c("score_pool3", pool3, 0, relu=False, extra=1e-4)
    h3, w3 = upscore_pool4.shape[1], upscore_pool4.shape[2]
    fuse3 = score_pool3[:, 9:9 + h3, 9:9 + w3, :] + upscore_pool4
    upscore8 = conv_transpose2d_nhwc(fuse3, qp["upscore8"], 8, 16)

    out = upscore8[:, 31:31 + xs[2], 31:31 + xs[3], :]
    return out.transpose(0, 3, 1, 2).astype(jnp.float32)    # back to NCHW f32


# ---------------------------------------------------------------------------
if __name__ == "__main__":
    num_classes = 5
    key = jax.random.PRNGKey(0)
    kp, kx = jax.random.split(key)
    params = make_params(kp, num_classes)
    x = jax.random.normal(kx, (1, 3, 16, 16), jnp.float32)   # NCHW, like PyTorch

    qparams = jax.block_until_ready(prepare_params(params))  # Pallas quantization
    out = jax.block_until_ready(fcn8s_forward(qparams, x))

    assert out.shape == (1, num_classes, 16, 16), out.shape
    assert bool(jnp.all(jnp.isfinite(out)))
    print("KERNEL_OK")
</pallas_src>

<mosaic_0001>
module attributes {stable_mosaic.version = 11 : i64} {
  func.func @_maxabs_kernel(%arg0: i32, %arg1: memref<16x1024xf32, #tpu.memory_space<vmem>>, %arg2: memref<1x1xf32, #tpu.memory_space<vmem>>) attributes {dimension_semantics = [#tpu.dimension_semantics<arbitrary>], iteration_bounds = array<i64: 1>, scalar_prefetch = 0 : i64, scratch_operands = 0 : i64, tpu.core_type = #tpu.core_type<tc>, window_params = [{transform_indices = @transform_0, window_bounds = array<i64: 16, 1024>}, {pipeline_mode = #tpu.pipeline_mode<synchronous>, transform_indices = @transform_1, window_bounds = array<i64: 1, 1>}]} {
    %c0_i32 = arith.constant 0 : i32
    %0 = arith.cmpi eq, %arg0, %c0_i32 : i32
    %1 = arith.extui %0 : i1 to i32
    %c0_i32_0 = arith.constant 0 : i32
    %2 = arith.cmpi ne, %1, %c0_i32_0 : i32
    scf.if %2 {
      %cst_8 = arith.constant 0.000000e+00 : f32
      %17 = vector.broadcast %cst_8 : f32 to vector<1x1xf32>
      %c0_9 = arith.constant 0 : index
      %c0_10 = arith.constant 0 : index
      %18 = vector.load %arg2[%c0_9, %c0_10] : memref<1x1xf32, #tpu.memory_space<vmem>>, vector<1x1xf32>
      tpu.vector_store %arg2[%c0_9, %c0_10], %17 {strides = array<i32>} : memref<1x1xf32, #tpu.memory_space<vmem>>, vector<1x1xf32>,
    } else {
    }
    %c0 = arith.constant 0 : index
    %c0_1 = arith.constant 0 : index
    %3 = vector.load %arg1[%c0, %c0_1] : memref<16x1024xf32, #tpu.memory_space<vmem>>, vector<16x1024xf32>
    %cst = arith.constant -1.000000e+00 : f32
    %cst_2 = arith.constant 1.000000e+00 : f32
    %4 = vector.broadcast %cst : f32 to vector<16x1024xf32>
    %5 = arith.maximumf %4, %3 : vector<16x1024xf32>
    %6 = vector.broadcast %cst_2 : f32 to vector<16x1024xf32>
    %7 = arith.minimumf %6, %5 : vector<16x1024xf32>
    %c0_3 = arith.constant 0 : index
    %c0_4 = arith.constant 0 : index
    %8 = vector.load %arg2[%c0_3, %c0_4] : memref<1x1xf32, #tpu.memory_space<vmem>>, vector<1x1xf32>
    %9 = math.absf %7 : vector<16x1024xf32>
    %10 = vector.shape_cast %9 : vector<16x1024xf32> to vector<1x16x1024xf32>
    %cst_5 = arith.constant dense<0xFF800000> : vector<1xf32>
    %11 = vector.multi_reduction <maximumf>, %10, %cst_5 [1, 2] : vector<1x16x1024xf32> to vector<1xf32>
    %12 = vector.shape_cast %11 : vector<1xf32> to vector<1x1x1xf32>
    %13 = vector.extract %12[0, 0, 0] : f32 from vector<1x1x1xf32>
    %14 = vector.broadcast %13 : f32 to vector<1x1xf32>
    %15 = arith.maximumf %8, %14 : vector<1x1xf32>
    %c0_6 = arith.constant 0 : index
    %c0_7 = arith.constant 0 : index
    %16 = vector.load %arg2[%c0_6, %c0_7] : memref<1x1xf32, #tpu.memory_space<vmem>>, vector<1x1xf32>
    tpu.vector_store %arg2[%c0_6, %c0_7], %15 {strides = array<i32>} : memref<1x1xf32, #tpu.memory_space<vmem>>, vector<1x1xf32>,
    return
  }
  func.func @transform_0(%arg0: i32) -> (i32, i32) {
    %c0_i32 = arith.constant 0 : i32
    %c0_i32_0 = arith.constant 0 : i32
    return %arg0, %c0_i32 : i32, i32
  }
  func.func @transform_1(%arg0: i32) -> (i32, i32) {
    %c0_i32 = arith.constant 0 : i32
    %c0_i32_0 = arith.constant 0 : i32
    %c0_i32_1 = arith.constant 0 : i32
    return %c0_i32, %c0_i32_0 : i32, i32
  }
}

</mosaic_0001>

<llo_original>
// kernel: tpu_custom_call.1
$region0: #{tpu_custom_call.1}
  #allocation0 [shape = 'u32[]', space=smem, size = 0x4, offset = 0x4, fixed_abs, tag = 'smem constant byte address 0x4 - core index']
  #allocation1 [shape = 'u32[144,128]{1,0:T(1,128)}', space=vmem, size = 0x12000, scoped, tag = 'internal scratch']
  %s0 = inlined_call_operand.hbm [shape: f32[16,1024], index: 0, kind: input, shape index: {}]
  %s1 = inlined_call_operand.hbm [shape: f32[1,1], index: 1, kind: output, shape index: {}]
  %s2 = sld [smem:[#allocation0]]
  $region22: #{tpu_custom_call.1} parent=0
    _
  %s4 = ssub.s32 1, %s2
  %s5 = scalar_select 0, %s4, %s2
  $region1: #{tpu_custom_call.1} parent=0
    #allocation2 [shape = 'u8[65536]{0}', space=vmem, size = 0x10000, scoped, tag = 'input window, operand 0, single buffered']
    #allocation3 [shape = 's32[1]{0}', space=sflag, size = 0x4, scoped, tag = 'scoped memory for tpu_custom_call.1']
    #allocation4 [shape = 's32[1]{0}', space=sflag, size = 0x4, scoped, tag = 'scoped memory for tpu_custom_call.1']
    #allocation5 [shape = 'u8[512]{0}', space=vmem, size = 0x400, scoped, tag = 'output window, operand 0, single buffered']
    %6 = vsyncpa [#allocation3], 0
    %7 = vsyncpa [#allocation4], 0
    // Predicated region
    $region2: #{tpu_custom_call.1} parent=1 // pred_check
      _
    $region3: #{tpu_custom_call.1} parent=1 // pred_check_branch
      %9 = sbr.rel (0) target = $region5
    $region4: #{tpu_custom_call.1} parent=1 // pred_region
      %s11 = ssub.s32 2048, 2048
      %12 = vsyncadd [#allocation3], %s11
      %s13 = sshll.u32 [#allocation2], 4
      %s14 = int_to_ptr.vmem [resolvable:$true] %s13
      %19 = dma.hbm_to_vmem [thread:$0]  %s0, 2048, %s14, [#allocation3], 1024, 1024, 64
    $region5: #{tpu_custom_call.1} parent=1 // pred_fallthru
      _
    // Predicated region
    $region6: #{tpu_custom_call.1} parent=1 // pred_check
      _
    $region7: #{tpu_custom_call.1} parent=1 // pred_check_branch
      %21 = sbr.rel (0) target = $region9
    $region8: #{tpu_custom_call.1} parent=1 // pred_region
      %22 = dma.done [#allocation3], 2048
    $region9: #{tpu_custom_call.1} parent=1 // pred_fallthru
      _
    %p23 = scmp.eq.s32.totalorder 0, 0
    // Predicated region
    $region10: #{tpu_custom_call.1} parent=1 // pred_check
      %p24 = pneg %p23
    $region11: #{tpu_custom_call.1} parent=1 // pred_check_branch
      %26 = sbr.rel (%p24) target = $region13
    $region12: #{tpu_custom_call.1} parent=1 // pred_region
      %vm27 = vcmask 0
      %28 = vst.msk [vmem:[#allocation5] sm:$0x1] %vm27, 0.0
    $region13: #{tpu_custom_call.1} parent=1 // pred_fallthru
      _
    %v29 = vld [vmem:[#allocation2] sm:$0xff]
    %v30 = vld [vmem:[#allocation2 + $0x8] sm:$0xff]
    %v31 = vld [vmem:[#allocation2 + $0x10] sm:$0xff]
    %v32 = vld [vmem:[#allocation2 + $0x18] sm:$0xff]
    %v33 = vld [vmem:[#allocation2 + $0x20] sm:$0xff]
    %v34 = vld [vmem:[#allocation2 + $0x28] sm:$0xff]
    %v35 = vld [vmem:[#allocation2 + $0x30] sm:$0xff]
    %v36 = vld [vmem:[#allocation2 + $0x38] sm:$0xff]
    %v37 = vld [vmem:[#allocation2 + $0x40] sm:$0xff]
    %v38 = vld [vmem:[#allocation2 + $0x48] sm:$0xff]
    %v39 = vld [vmem:[#allocation2 + $0x50] sm:$0xff]
    %v40 = vld [vmem:[#allocation2 + $0x58] sm:$0xff]
    %v41 = vld [vmem:[#allocation2 + $0x60] sm:$0xff]
    %v42 = vld [vmem:[#allocation2 + $0x68] sm:$0xff]
    %v43 = vld [vmem:[#allocation2 + $0x70] sm:$0xff]
    %v44 = vld [vmem:[#allocation2 + $0x78] sm:$0xff]
    %v45 = vmax.f32 %v29, -1.0
    %v46 = vmax.f32 %v30, -1.0
    %v47 = vmax.f32 %v31, -1.0
    %v48 = vmax.f32 %v32, -1.0
    %v49 = vmax.f32 %v33, -1.0
    %v50 = vmax.f32 %v34, -1.0
    %v51 = vmax.f32 %v35, -1.0
    %v52 = vmax.f32 %v36, -1.0
    %v53 = vmax.f32 %v37, -1.0
    %v54 = vmax.f32 %v38, -1.0
    %v55 = vmax.f32 %v39, -1.0
    %v56 = vmax.f32 %v40, -1.0
    %v57 = vmax.f32 %v41, -1.0
    %v58 = vmax.f32 %v42, -1.0
    %v59 = vmax.f32 %v43, -1.0
    %v60 = vmax.f32 %v44, -1.0
    %v61 = vmin.f32 %v45, 1.0
    %v62 = vmin.f32 %v46, 1.0
    %v63 = vmin.f32 %v47, 1.0
    %v64 = vmin.f32 %v48, 1.0
    %v65 = vmin.f32 %v49, 1.0
    %v66 = vmin.f32 %v50, 1.0
    %v67 = vmin.f32 %v51, 1.0
    %v68 = vmin.f32 %v52, 1.0
    %v69 = vmin.f32 %v53, 1.0
    %v70 = vmin.f32 %v54, 1.0
    %v71 = vmin.f32 %v55, 1.0
    %v72 = vmin.f32 %v56, 1.0
    %v73 = vmin.f32 %v57, 1.0
    %v74 = vmin.f32 %v58, 1.0
    %v75 = vmin.f32 %v59, 1.0
    %v76 = vmin.f32 %v60, 1.0
    %v77 = vld [vmem:[#allocation5] sm:$0x1]
    %v78 = vand.u32 2147483647, %v61
    %v79 = vand.u32 2147483647, %v62
    %v80 = vand.u32 2147483647, %v63
    %v81 = vand.u32 2147483647, %v64
    %v82 = vand.u32 2147483647, %v65
    %v83 = vand.u32 2147483647, %v66
    %v84 = vand.u32 2147483647, %v67
    %v85 = vand.u32 2147483647, %v68
    %v86 = vand.u32 2147483647, %v69
    %v87 = vand.u32 2147483647, %v70
    %v88 = vand.u32 2147483647, %v71
    %v89 = vand.u32 2147483647, %v72
    %v90 = vand.u32 2147483647, %v73
    %v91 = vand.u32 2147483647, %v74
    %v92 = vand.u32 2147483647, %v75
    %v93 = vand.u32 2147483647, %v76
    %v94 = vmax.f32 %v78, %v82
    %v95 = vmax.f32 %v79, %v83
    %v96 = vmax.f32 %v80, %v84
    %v97 = vmax.f32 %v81, %v85
    %v98 = vmax.f32 %v94, %v86
    %v99 = vmax.f32 %v95, %v87
    %v100 = vmax.f32 %v96, %v88
    %v101 = vmax.f32 %v97, %v89
    %v102 = vmax.f32 %v98, %v90
    %v103 = vmax.f32 %v99, %v91
    %v104 = vmax.f32 %v100, %v92
    %v105 = vmax.f32 %v101, %v93
    %v106 = vmax.f32 %v102, %v103
    %v107 = vmax.f32 %v104, %v105
    %v108 = vmax.f32 %v106, %v107
    %109 = vmax.xlane.f32.xlu0 %v108
    %v110 = vpop.xlane.xlu0 %109
    %v111 = vrot.slane %v110, 4
    %v112 = vmax.f32 %v110, %v111
    %v113 = vrot.slane %v112, 2
    %v114 = vmax.f32 %v112, %v113
    %v115 = vrot.slane %v114, 1
    %v116 = vmax.f32 %v114, %v115
    %s117 = vtos %v116
    %v118 = vstv %s117
    %v119 = vmax.f32 %v77, %v118
    %vm120 = vcmask 0
    %121 = vst.msk [vmem:[#allocation5] sm:$0x1] %vm120, %v119
    // Predicated region
    $region14: #{tpu_custom_call.1} parent=1 // pred_check
      _
    $region15: #{tpu_custom_call.1} parent=1 // pred_check_branch
      %123 = sbr.rel (0) target = $region17
    $region16: #{tpu_custom_call.1} parent=1 // pred_region
      %s125 = ssub.s32 16, 16
      %126 = vsyncadd [#allocation4], %s125
      %s128 = sshll.u32 [#allocation5], 4
      %s129 = int_to_ptr.vmem [resolvable:$true] %s128
      %131 = dma.vmem_to_hbm [thread:$0]  %s129, 16, %s1, [#allocation4]
    $region17: #{tpu_custom_call.1} parent=1 // pred_fallthru
      _
    // Predicated region
    $region18: #{tpu_custom_call.1} parent=1 // pred_check
      _
    $region19: #{tpu_custom_call.1} parent=1 // pred_check_branch
      %133 = sbr.rel (0) target = $region21
    $region20: #{tpu_custom_call.1} parent=1 // pred_region
      %134 = dma.done [#allocation4], 16
    $region21: #{tpu_custom_call.1} parent=1 // pred_fallthru
      _
    %135 = vsyncpa [#allocation3], 1
    %136 = vsyncpa [#allocation4], 1

</llo_original>
